<compile_context>
chip_gen: v6e
topology: v6e:2x2x1
jax: 0.10.0
libtpu: 0.0.40
codegen_flags: <defaults>
</compile_context>

<pallas_src>
import functools

import jax
import jax.numpy as jnp
from jax.experimental import pallas as pl
from jax.experimental.pallas import tpu as pltpu


def _rnn_step_kernel(idx_ref, embed_ref, w_ihT_ref, w_hhT_ref, b_ref,
                     h0_ref, c0_ref, fc_wt_ref, fc_b_ref,
                     out_ref, h_out_ref, c_out_ref,
                     *, num_layers, hidden_size, vocab_size):
    H = hidden_size
    L = num_layers
    V = vocab_size
    B = idx_ref.shape[0]

    # --- Embedding: one-hot (broadcasted iota == idx column) + one MXU
    # matmul against the VMEM-resident table.  No scalar-copy chain, no
    # scratch round-trip.
    iota = jax.lax.broadcasted_iota(jnp.int32, (B, V), 1)
    onehot = (iota == idx_ref[...]).astype(jnp.float32)          # (B, V)
    x_t = jnp.dot(onehot, embed_ref[...],
                  preferred_element_type=jnp.float32)            # (B, H)

    # --- Precompute the h-half of every layer's gates.  These depend only on
    # kernel inputs (h0, w_hh, b), so they issue up front and overlap with the
    # serial x_t -> gates -> h chain below.
    gates_h = [
        jnp.dot(h0_ref[layer], w_hhT_ref[layer],
                preferred_element_type=jnp.float32) + b_ref[layer]   # (B, 4H)
        for layer in range(L)
    ]

    # --- Stacked LSTM, single time step (seq_len == 1) ---
    for layer in range(L):
        gates = (
            jnp.dot(x_t, w_ihT_ref[layer],
                    preferred_element_type=jnp.float32)
            + gates_h[layer]
        )                                                        # (B, 4H)
        # One full-vreg sigmoid covers i/f/o; tanh only on the g block.
        sig = jax.nn.sigmoid(gates)
        i_g = sig[:, 0 * H:1 * H]
        f_g = sig[:, 1 * H:2 * H]
        o_g = sig[:, 3 * H:4 * H]
        g_g = jnp.tanh(gates[:, 2 * H:3 * H])
        c_new = f_g * c0_ref[layer] + i_g * g_g
        h_new = o_g * jnp.tanh(c_new)
        h_out_ref[layer] = h_new
        c_out_ref[layer] = c_new
        x_t = h_new

    # --- Final Linear: fc(out.reshape(B, -1)) with seq_len == 1 ---
    out_ref[...] = (
        jnp.dot(x_t, fc_wt_ref[...], preferred_element_type=jnp.float32)
        + fc_b_ref[...]
    )


def rnn_forward(x_idx, hidden, cell, params):
    """Pallas-backed forward pass matching RNN.forward(x, hidden, cell)."""
    embed_w, w_ih, w_hh, b_ih, b_hh, fc_w, fc_b = params
    B = x_idx.shape[0]
    L, _, H = hidden.shape
    V = embed_w.shape[0]
    O = fc_w.shape[0]

    # Free layout plumbing in the wrapper: pre-transpose gate weight halves,
    # pre-sum biases, pre-transpose the fc weight, pre-broadcast fc bias.
    w_ihT = jnp.transpose(w_ih, (0, 2, 1))           # (L, H, 4H)
    w_hhT = jnp.transpose(w_hh, (0, 2, 1))           # (L, H, 4H)
    b_cat = (b_ih + b_hh)[:, None, :]                # (L, 1, 4H)
    fc_wt = fc_w.T                                   # (H, O)
    fc_b2 = fc_b[None, :]                            # (1, O)
    idx2 = x_idx.astype(jnp.int32)[:, None]          # (B, 1) VMEM column

    kernel = functools.partial(_rnn_step_kernel, num_layers=L,
                               hidden_size=H, vocab_size=V)

    flops = (2 * B * V * H                 # one-hot embedding matmul
             + L * (2 * 2 * B * H * 4 * H)  # x@Wih + h@Whh per layer
             + 2 * B * H * O)              # fc
    transcendentals = 6 * B * H * L        # sigmoid(4H) + 2*tanh(H) per layer
    bytes_accessed = sum(
        int(a.size) * a.dtype.itemsize
        for a in (idx2, embed_w, w_ihT, w_hhT, b_cat, hidden, cell,
                  fc_wt, fc_b2))
    bytes_accessed += (B * O + 2 * L * B * H) * 4    # outputs

    vmem_spec = pl.BlockSpec(memory_space=pltpu.MemorySpace.VMEM)
    out, h_new, c_new = pl.pallas_call(
        kernel,
        out_shape=(
            jax.ShapeDtypeStruct((B, O), jnp.float32),
            jax.ShapeDtypeStruct((L, B, H), jnp.float32),
            jax.ShapeDtypeStruct((L, B, H), jnp.float32),
        ),
        in_specs=[
            vmem_spec,   # 0 token ids (B, 1)
            vmem_spec,   # 1 embed table
            vmem_spec,   # 2 w_ihT
            vmem_spec,   # 3 w_hhT
            vmem_spec,   # 4 b_cat
            vmem_spec,   # 5 hidden
            vmem_spec,   # 6 cell
            vmem_spec,   # 7 fc_wt
            vmem_spec,   # 8 fc_b
        ],
        out_specs=(vmem_spec, vmem_spec, vmem_spec),
        # Donate the state buffers: hidden -> h', cell -> c'.
        input_output_aliases={5: 1, 6: 2},
        cost_estimate=pl.CostEstimate(flops=flops,
                                      transcendentals=transcendentals,
                                      bytes_accessed=bytes_accessed),
    )(idx2, embed_w, w_ihT, w_hhT, b_cat, hidden, cell, fc_wt, fc_b2)
    return out, (h_new, c_new)


def init_params(key, input_size, hidden_size, num_layers, output_size):
    """Deterministic synthetic parameter init (PyTorch shapes)."""
    ks = jax.random.split(key, 7)
    H, L = hidden_size, num_layers
    scale = 1.0 / jnp.sqrt(H)
    embed_w = jax.random.normal(ks[0], (input_size, H), jnp.float32)
    w_ih = jax.random.uniform(ks[1], (L, 4 * H, H), jnp.float32, -scale, scale)
    w_hh = jax.random.uniform(ks[2], (L, 4 * H, H), jnp.float32, -scale, scale)
    b_ih = jax.random.uniform(ks[3], (L, 4 * H), jnp.float32, -scale, scale)
    b_hh = jax.random.uniform(ks[4], (L, 4 * H), jnp.float32, -scale, scale)
    fc_w = jax.random.uniform(ks[5], (output_size, H), jnp.float32,
                              -scale, scale)
    fc_b = jax.random.uniform(ks[6], (output_size,), jnp.float32,
                              -scale, scale)
    return embed_w, w_ih, w_hh, b_ih, b_hh, fc_w, fc_b


def rnn_forward_ref(x_idx, hidden, cell, params):
    """Pure-JAX reference mirroring the PyTorch forward."""
    embed_w, w_ih, w_hh, b_ih, b_hh, fc_w, fc_b = params
    L, _, H = hidden.shape
    x_t = embed_w[x_idx]                                        # (B, H)
    h_out, c_out = [], []
    for l in range(L):
        gates = (x_t @ w_ih[l].T + b_ih[l]
                 + hidden[l] @ w_hh[l].T + b_hh[l])
        i_g = jax.nn.sigmoid(gates[:, 0 * H:1 * H])
        f_g = jax.nn.sigmoid(gates[:, 1 * H:2 * H])
        g_g = jnp.tanh(gates[:, 2 * H:3 * H])
        o_g = jax.nn.sigmoid(gates[:, 3 * H:4 * H])
        c_new = f_g * cell[l] + i_g * g_g
        h_new = o_g * jnp.tanh(c_new)
        h_out.append(h_new)
        c_out.append(c_new)
        x_t = h_new
    out = x_t @ fc_w.T + fc_b
    return out, (jnp.stack(h_out), jnp.stack(c_out))


if __name__ == "__main__":
    input_size = 32     # vocab size
    hidden_size = 32
    num_layers = 2
    output_size = 32
    batch = 8

    key = jax.random.PRNGKey(0)
    k_param, k_x = jax.random.split(key)
    params = init_params(k_param, input_size, hidden_size, num_layers,
                         output_size)

    x = jax.random.randint(k_x, (batch,), 0, input_size, dtype=jnp.int32)
    hidden0 = jnp.zeros((num_layers, batch, hidden_size), jnp.float32)
    cell0 = jnp.zeros((num_layers, batch, hidden_size), jnp.float32)

    # Reference first (state inputs are reused; kernel aliasing is HBM-level
    # and does not clobber them, but keep the ordering defensive anyway).
    out_ref, (h_ref, c_ref) = rnn_forward_ref(x, hidden0, cell0, params)

    out, (h1, c1) = rnn_forward(x, hidden0, cell0, params)
    out = jax.block_until_ready(out)
    h1 = jax.block_until_ready(h1)
    c1 = jax.block_until_ready(c1)

    assert jnp.allclose(out, out_ref, atol=1e-5, rtol=1e-5)
    assert jnp.allclose(h1, h_ref, atol=1e-5, rtol=1e-5)
    assert jnp.allclose(c1, c_ref, atol=1e-5, rtol=1e-5)

    print("KERNEL_OK")
</pallas_src>

<mosaic_0001>
module attributes {stable_mosaic.version = 11 : i64} {
  func.func @_rnn_step_kernel(%arg0: memref<8x1xi32, #tpu.memory_space<vmem>>, %arg1: memref<32x32xf32, #tpu.memory_space<vmem>>, %arg2: memref<2x32x128xf32, #tpu.memory_space<vmem>>, %arg3: memref<2x32x128xf32, #tpu.memory_space<vmem>>, %arg4: memref<2x1x128xf32, #tpu.memory_space<vmem>>, %arg5: memref<2x8x32xf32, #tpu.memory_space<vmem>>, %arg6: memref<2x8x32xf32, #tpu.memory_space<vmem>>, %arg7: memref<32x32xf32, #tpu.memory_space<vmem>>, %arg8: memref<1x32xf32, #tpu.memory_space<vmem>>, %arg9: memref<8x32xf32, #tpu.memory_space<vmem>>, %arg10: memref<2x8x32xf32, #tpu.memory_space<vmem>>, %arg11: memref<2x8x32xf32, #tpu.memory_space<vmem>>) attributes {dimension_semantics = [], scalar_prefetch = 0 : i64, scratch_operands = 0 : i64, tpu.core_type = #tpu.core_type<tc>} {
    %0 = tpu.iota {dimensions = array<i32: 1>} : vector<8x32xi32>
    %c0 = arith.constant 0 : index
    %c0_0 = arith.constant 0 : index
    %1 = vector.load %arg0[%c0, %c0_0] : memref<8x1xi32, #tpu.memory_space<vmem>>, vector<8x1xi32>
    %2 = vector.broadcast %1 : vector<8x1xi32> to vector<8x32xi32>
    %3 = arith.cmpi eq, %0, %2 : vector<8x32xi32>
    %4 = arith.extui %3 : vector<8x32xi1> to vector<8x32xi32>
    %5 = arith.sitofp %4 : vector<8x32xi32> to vector<8x32xf32>
    %c0_1 = arith.constant 0 : index
    %c0_2 = arith.constant 0 : index
    %6 = vector.load %arg1[%c0_1, %c0_2] : memref<32x32xf32, #tpu.memory_space<vmem>>, vector<32x32xf32>
    %cst = arith.constant dense<0.000000e+00> : vector<8x32xf32>
    %7 = tpu.matmul %5, %6, %cst {dimension_numbers = #tpu.dot_dimension_numbers<[1], [0], [0], [1], [0, 0, 1, 1], [], []>} : vector<8x32xf32>, vector<32x32xf32>, vector<8x32xf32> -> vector<8x32xf32>
    %c0_3 = arith.constant 0 : index
    %c0_4 = arith.constant 0 : index
    %c0_5 = arith.constant 0 : index
    %8 = vector.load %arg5[%c0_3, %c0_4, %c0_5] : memref<2x8x32xf32, #tpu.memory_space<vmem>>, vector<1x8x32xf32>
    %9 = vector.shape_cast %8 : vector<1x8x32xf32> to vector<8x32xf32>
    %c0_6 = arith.constant 0 : index
    %c0_7 = arith.constant 0 : index
    %c0_8 = arith.constant 0 : index
    %10 = vector.load %arg3[%c0_6, %c0_7, %c0_8] : memref<2x32x128xf32, #tpu.memory_space<vmem>>, vector<1x32x128xf32>
    %11 = vector.shape_cast %10 : vector<1x32x128xf32> to vector<32x128xf32>
    %cst_9 = arith.constant dense<0.000000e+00> : vector<8x128xf32>
    %12 = tpu.matmul %9, %11, %cst_9 {dimension_numbers = #tpu.dot_dimension_numbers<[1], [0], [0], [1], [0, 0, 1, 1], [], []>} : vector<8x32xf32>, vector<32x128xf32>, vector<8x128xf32> -> vector<8x128xf32>
    %c0_10 = arith.constant 0 : index
    %c0_11 = arith.constant 0 : index
    %c0_12 = arith.constant 0 : index
    %13 = vector.load %arg4[%c0_10, %c0_11, %c0_12] : memref<2x1x128xf32, #tpu.memory_space<vmem>>, vector<1x1x128xf32>
    %14 = vector.shape_cast %13 : vector<1x1x128xf32> to vector<1x128xf32>
    %15 = vector.broadcast %14 : vector<1x128xf32> to vector<8x128xf32>
    %16 = arith.addf %12, %15 : vector<8x128xf32>
    %c1 = arith.constant 1 : index
    %c0_13 = arith.constant 0 : index
    %c0_14 = arith.constant 0 : index
    %17 = vector.load %arg5[%c1, %c0_13, %c0_14] : memref<2x8x32xf32, #tpu.memory_space<vmem>>, vector<1x8x32xf32>
    %18 = vector.shape_cast %17 : vector<1x8x32xf32> to vector<8x32xf32>
    %c1_15 = arith.constant 1 : index
    %c0_16 = arith.constant 0 : index
    %c0_17 = arith.constant 0 : index
    %19 = vector.load %arg3[%c1_15, %c0_16, %c0_17] : memref<2x32x128xf32, #tpu.memory_space<vmem>>, vector<1x32x128xf32>
    %20 = vector.shape_cast %19 : vector<1x32x128xf32> to vector<32x128xf32>
    %cst_18 = arith.constant dense<0.000000e+00> : vector<8x128xf32>
    %21 = tpu.matmul %18, %20, %cst_18 {dimension_numbers = #tpu.dot_dimension_numbers<[1], [0], [0], [1], [0, 0, 1, 1], [], []>} : vector<8x32xf32>, vector<32x128xf32>, vector<8x128xf32> -> vector<8x128xf32>
    %c1_19 = arith.constant 1 : index
    %c0_20 = arith.constant 0 : index
    %c0_21 = arith.constant 0 : index
    %22 = vector.load %arg4[%c1_19, %c0_20, %c0_21] : memref<2x1x128xf32, #tpu.memory_space<vmem>>, vector<1x1x128xf32>
    %23 = vector.shape_cast %22 : vector<1x1x128xf32> to vector<1x128xf32>
    %24 = vector.broadcast %23 : vector<1x128xf32> to vector<8x128xf32>
    %25 = arith.addf %21, %24 : vector<8x128xf32>
    %c0_22 = arith.constant 0 : index
    %c0_23 = arith.constant 0 : index
    %c0_24 = arith.constant 0 : index
    %26 = vector.load %arg2[%c0_22, %c0_23, %c0_24] : memref<2x32x128xf32, #tpu.memory_space<vmem>>, vector<1x32x128xf32>
    %27 = vector.shape_cast %26 : vector<1x32x128xf32> to vector<32x128xf32>
    %cst_25 = arith.constant dense<0.000000e+00> : vector<8x128xf32>
    %28 = tpu.matmul %7, %27, %cst_25 {dimension_numbers = #tpu.dot_dimension_numbers<[1], [0], [0], [1], [0, 0, 1, 1], [], []>} : vector<8x32xf32>, vector<32x128xf32>, vector<8x128xf32> -> vector<8x128xf32>
    %29 = arith.addf %28, %16 : vector<8x128xf32>
    %30 = arith.negf %29 : vector<8x128xf32>
    %31 = math.exp %30 : vector<8x128xf32>
    %cst_26 = arith.constant 1.000000e+00 : f32
    %32 = vector.broadcast %cst_26 : f32 to vector<8x128xf32>
    %33 = arith.addf %32, %31 : vector<8x128xf32>
    %34 = arith.divf %32, %33 : vector<8x128xf32>
    %35 = vector.extract_strided_slice %34 {offsets = [0, 0], sizes = [8, 32], strides = [1, 1]} : vector<8x128xf32> to vector<8x32xf32>
    %36 = vector.extract_strided_slice %34 {offsets = [0, 32], sizes = [8, 32], strides = [1, 1]} : vector<8x128xf32> to vector<8x32xf32>
    %37 = vector.extract_strided_slice %34 {offsets = [0, 96], sizes = [8, 32], strides = [1, 1]} : vector<8x128xf32> to vector<8x32xf32>
    %38 = vector.extract_strided_slice %29 {offsets = [0, 64], sizes = [8, 32], strides = [1, 1]} : vector<8x128xf32> to vector<8x32xf32>
    %39 = math.tanh %38 : vector<8x32xf32>
    %c0_27 = arith.constant 0 : index
    %c0_28 = arith.constant 0 : index
    %c0_29 = arith.constant 0 : index
    %40 = vector.load %arg6[%c0_27, %c0_28, %c0_29] : memref<2x8x32xf32, #tpu.memory_space<vmem>>, vector<1x8x32xf32>
    %41 = vector.shape_cast %40 : vector<1x8x32xf32> to vector<8x32xf32>
    %42 = arith.mulf %36, %41 : vector<8x32xf32>
    %43 = arith.mulf %35, %39 : vector<8x32xf32>
    %44 = arith.addf %42, %43 : vector<8x32xf32>
    %45 = math.tanh %44 : vector<8x32xf32>
    %46 = arith.mulf %37, %45 : vector<8x32xf32>
    %c0_30 = arith.constant 0 : index
    %c0_31 = arith.constant 0 : index
    %c0_32 = arith.constant 0 : index
    %47 = vector.load %arg10[%c0_30, %c0_31, %c0_32] : memref<2x8x32xf32, #tpu.memory_space<vmem>>, vector<1x8x32xf32>
    %48 = vector.shape_cast %47 : vector<1x8x32xf32> to vector<8x32xf32>
    %49 = vector.shape_cast %46 : vector<8x32xf32> to vector<1x8x32xf32>
    tpu.vector_store %arg10[%c0_30, %c0_31, %c0_32], %49 {strides = array<i32>} : memref<2x8x32xf32, #tpu.memory_space<vmem>>, vector<1x8x32xf32>,
    %c0_33 = arith.constant 0 : index
    %c0_34 = arith.constant 0 : index
    %c0_35 = arith.constant 0 : index
    %50 = vector.load %arg11[%c0_33, %c0_34, %c0_35] : memref<2x8x32xf32, #tpu.memory_space<vmem>>, vector<1x8x32xf32>
    %51 = vector.shape_cast %50 : vector<1x8x32xf32> to vector<8x32xf32>
    %52 = vector.shape_cast %44 : vector<8x32xf32> to vector<1x8x32xf32>
    tpu.vector_store %arg11[%c0_33, %c0_34, %c0_35], %52 {strides = array<i32>} : memref<2x8x32xf32, #tpu.memory_space<vmem>>, vector<1x8x32xf32>,
    %c1_36 = arith.constant 1 : index
    %c0_37 = arith.constant 0 : index
    %c0_38 = arith.constant 0 : index
    %53 = vector.load %arg2[%c1_36, %c0_37, %c0_38] : memref<2x32x128xf32, #tpu.memory_space<vmem>>, vector<1x32x128xf32>
    %54 = vector.shape_cast %53 : vector<1x32x128xf32> to vector<32x128xf32>
    %cst_39 = arith.constant dense<0.000000e+00> : vector<8x128xf32>
    %55 = tpu.matmul %46, %54, %cst_39 {dimension_numbers = #tpu.dot_dimension_numbers<[1], [0], [0], [1], [0, 0, 1, 1], [], []>} : vector<8x32xf32>, vector<32x128xf32>, vector<8x128xf32> -> vector<8x128xf32>
    %56 = arith.addf %55, %25 : vector<8x128xf32>
    %57 = arith.negf %56 : vector<8x128xf32>
    %58 = math.exp %57 : vector<8x128xf32>
    %cst_40 = arith.constant 1.000000e+00 : f32
    %59 = vector.broadcast %cst_40 : f32 to vector<8x128xf32>
    %60 = arith.addf %59, %58 : vector<8x128xf32>
    %61 = arith.divf %59, %60 : vector<8x128xf32>
    %62 = vector.extract_strided_slice %61 {offsets = [0, 0], sizes = [8, 32], strides = [1, 1]} : vector<8x128xf32> to vector<8x32xf32>
    %63 = vector.extract_strided_slice %61 {offsets = [0, 32], sizes = [8, 32], strides = [1, 1]} : vector<8x128xf32> to vector<8x32xf32>
    %64 = vector.extract_strided_slice %61 {offsets = [0, 96], sizes = [8, 32], strides = [1, 1]} : vector<8x128xf32> to vector<8x32xf32>
    %65 = vector.extract_strided_slice %56 {offsets = [0, 64], sizes = [8, 32], strides = [1, 1]} : vector<8x128xf32> to vector<8x32xf32>
    %66 = math.tanh %65 : vector<8x32xf32>
    %c1_41 = arith.constant 1 : index
    %c0_42 = arith.constant 0 : index
    %c0_43 = arith.constant 0 : index
    %67 = vector.load %arg6[%c1_41, %c0_42, %c0_43] : memref<2x8x32xf32, #tpu.memory_space<vmem>>, vector<1x8x32xf32>
    %68 = vector.shape_cast %67 : vector<1x8x32xf32> to vector<8x32xf32>
    %69 = arith.mulf %63, %68 : vector<8x32xf32>
    %70 = arith.mulf %62, %66 : vector<8x32xf32>
    %71 = arith.addf %69, %70 : vector<8x32xf32>
    %72 = math.tanh %71 : vector<8x32xf32>
    %73 = arith.mulf %64, %72 : vector<8x32xf32>
    %c1_44 = arith.constant 1 : index
    %c0_45 = arith.constant 0 : index
    %c0_46 = arith.constant 0 : index
    %74 = vector.load %arg10[%c1_44, %c0_45, %c0_46] : memref<2x8x32xf32, #tpu.memory_space<vmem>>, vector<1x8x32xf32>
    %75 = vector.shape_cast %74 : vector<1x8x32xf32> to vector<8x32xf32>
    %76 = vector.shape_cast %73 : vector<8x32xf32> to vector<1x8x32xf32>
    tpu.vector_store %arg10[%c1_44, %c0_45, %c0_46], %76 {strides = array<i32>} : memref<2x8x32xf32, #tpu.memory_space<vmem>>, vector<1x8x32xf32>,
    %c1_47 = arith.constant 1 : index
    %c0_48 = arith.constant 0 : index
    %c0_49 = arith.constant 0 : index
    %77 = vector.load %arg11[%c1_47, %c0_48, %c0_49] : memref<2x8x32xf32, #tpu.memory_space<vmem>>, vector<1x8x32xf32>
    %78 = vector.shape_cast %77 : vector<1x8x32xf32> to vector<8x32xf32>
    %79 = vector.shape_cast %71 : vector<8x32xf32> to vector<1x8x32xf32>
    tpu.vector_store %arg11[%c1_47, %c0_48, %c0_49], %79 {strides = array<i32>} : memref<2x8x32xf32, #tpu.memory_space<vmem>>, vector<1x8x32xf32>,
    %c0_50 = arith.constant 0 : index
    %c0_51 = arith.constant 0 : index
    %80 = vector.load %arg7[%c0_50, %c0_51] : memref<32x32xf32, #tpu.memory_space<vmem>>, vector<32x32xf32>
    %cst_52 = arith.constant dense<0.000000e+00> : vector<8x32xf32>
    %81 = tpu.matmul %73, %80, %cst_52 {dimension_numbers = #tpu.dot_dimension_numbers<[1], [0], [0], [1], [0, 0, 1, 1], [], []>} : vector<8x32xf32>, vector<32x32xf32>, vector<8x32xf32> -> vector<8x32xf32>
    %c0_53 = arith.constant 0 : index
    %c0_54 = arith.constant 0 : index
    %82 = vector.load %arg8[%c0_53, %c0_54] : memref<1x32xf32, #tpu.memory_space<vmem>>, vector<1x32xf32>
    %83 = vector.broadcast %82 : vector<1x32xf32> to vector<8x32xf32>
    %84 = arith.addf %81, %83 : vector<8x32xf32>
    %c0_55 = arith.constant 0 : index
    %c0_56 = arith.constant 0 : index
    %85 = vector.load %arg9[%c0_55, %c0_56] : memref<8x32xf32, #tpu.memory_space<vmem>>, vector<8x32xf32>
    tpu.vector_store %arg9[%c0_55, %c0_56], %84 {strides = array<i32>} : memref<8x32xf32, #tpu.memory_space<vmem>>, vector<8x32xf32>,
    return
  }
}

</mosaic_0001>

<llo_original>
// kernel: tpu_custom_call.1
$region0: #{tpu_custom_call.1}
  #allocation0 [shape = 'u32[]', space=smem, size = 0x4, offset = 0x4, fixed_abs, tag = 'smem constant byte address 0x4 - core index']
  #allocation1 [shape = 'u32[144,128]{1,0:T(1,128)}', space=vmem, size = 0x12000, scoped, tag = 'internal scratch']
  %s0 = inlined_call_operand.vmem [shape: s32[8,1], index: 0, kind: input, shape index: {}]
  %s1 = inlined_call_operand.hbm [shape: f32[32,32], index: 1, kind: input, shape index: {}]
  %s2 = inlined_call_operand.vmem [shape: f32[2,32,128], index: 2, kind: input, shape index: {}]
  %s3 = inlined_call_operand.hbm [shape: f32[2,32,128], index: 3, kind: input, shape index: {}]
  %s4 = inlined_call_operand.vmem [shape: f32[2,1,128], index: 4, kind: input, shape index: {}]
  %s5 = inlined_call_operand.hbm [shape: f32[2,8,32], index: 5, kind: input, shape index: {}, may-alias: {5,10}]
  %s6 = inlined_call_operand.hbm [shape: f32[2,8,32], index: 6, kind: input, shape index: {}, may-alias: {6,11}]
  %s7 = inlined_call_operand.hbm [shape: f32[32,32], index: 7, kind: input, shape index: {}]
  %s8 = inlined_call_operand.vmem [shape: f32[1,32], index: 8, kind: input, shape index: {}]
  %s9 = inlined_call_operand.hbm [shape: f32[8,32], index: 9, kind: output, shape index: {0}]
  %s10 = inlined_call_operand.hbm [shape: f32[2,8,32], index: 10, kind: output, shape index: {1}, may-alias: {5,10}]
  %s11 = inlined_call_operand.hbm [shape: f32[2,8,32], index: 11, kind: output, shape index: {2}, may-alias: {6,11}]
  %12 = xla_tuple %s9, %s10, %s11
  %s13 = sld [smem:[#allocation0]]
  $region82: #{tpu_custom_call.1} parent=0
    _
  %s15 = ssub.s32 1, %s13
  %s16 = scalar_select 0, %s15, %s13
  $region1: #{tpu_custom_call.1} parent=0
    #allocation2 [shape = 'u8[16384]{0}', space=vmem, size = 0x4000, scoped, tag = 'input window, operand 1, single buffered']
    #allocation3 [shape = 's32[1]{0}', space=sflag, size = 0x4, scoped, tag = 'scoped memory for tpu_custom_call.1']
    #allocation4 [shape = 's32[1]{0}', space=sflag, size = 0x4, scoped, tag = 'scoped memory for tpu_custom_call.1']
    #allocation5 [shape = 'u8[32768]{0}', space=vmem, size = 0x8000, scoped, tag = 'input window, operand 3, single buffered']
    #allocation6 [shape = 's32[1]{0}', space=sflag, size = 0x4, scoped, tag = 'scoped memory for tpu_custom_call.1']
    #allocation7 [shape = 'u8[8192]{0}', space=vmem, size = 0x2000, scoped, tag = 'input window, operand 5, single buffered']
    #allocation8 [shape = 'u8[8192]{0}', space=vmem, size = 0x2000, scoped, tag = 'input window, operand 6, single buffered']
    #allocation9 [shape = 's32[1]{0}', space=sflag, size = 0x4, scoped, tag = 'scoped memory for tpu_custom_call.1']
    #allocation10 [shape = 'u8[16384]{0}', space=vmem, size = 0x4000, scoped, tag = 'input window, operand 7, single buffered']
    #allocation11 [shape = 'u8[4096]{0}', space=vmem, size = 0x1000, scoped, tag = 'output window, operand 0, single buffered']
    #allocation12 [shape = 'u8[8192]{0}', space=vmem, size = 0x2000, scoped, tag = 'output window, operand 1, single buffered']
    #allocation13 [shape = 's32[1]{0}', space=sflag, size = 0x4, scoped, tag = 'scoped memory for tpu_custom_call.1']
    #allocation14 [shape = 'u8[8192]{0}', space=vmem, size = 0x2000, scoped, tag = 'output window, operand 2, single buffered']
    %17 = vsyncpa [#allocation3], 0
    %18 = vsyncpa [#allocation6], 0
    %19 = vsyncpa [#allocation9], 0
    %20 = vsyncpa [#allocation4], 0
    %21 = vsyncpa [#allocation13], 0
    // Predicated region
    $region2: #{tpu_custom_call.1} parent=1 // pred_check
      _
    $region3: #{tpu_custom_call.1} parent=1 // pred_check_branch
      %23 = sbr.rel (0) target = $region5
    $region4: #{tpu_custom_call.1} parent=1 // pred_region
      _
    $region5: #{tpu_custom_call.1} parent=1 // pred_fallthru
      _
    // Predicated region
    $region6: #{tpu_custom_call.1} parent=1 // pred_check
      _
    $region7: #{tpu_custom_call.1} parent=1 // pred_check_branch
      %25 = sbr.rel (0) target = $region9
    $region8: #{tpu_custom_call.1} parent=1 // pred_region
      %s27 = ssub.s32 512, 512
      %28 = vsyncadd [#allocation3], %s27
      %s29 = sshll.u32 [#allocation2], 4
      %s30 = int_to_ptr.vmem [resolvable:$true] %s29
      %35 = dma.hbm_to_vmem [thread:$0]  %s1, 512, %s30, [#allocation3], 128, 128, 8
    $region9: #{tpu_custom_call.1} parent=1 // pred_fallthru
      _
    // Predicated region
    $region10: #{tpu_custom_call.1} parent=1 // pred_check
      _
    $region11: #{tpu_custom_call.1} parent=1 // pred_check_branch
      %37 = sbr.rel (0) target = $region13
    $region12: #{tpu_custom_call.1} parent=1 // pred_region
      _
    $region13: #{tpu_custom_call.1} parent=1 // pred_fallthru
      _
    // Predicated region
    $region14: #{tpu_custom_call.1} parent=1 // pred_check
      _
    $region15: #{tpu_custom_call.1} parent=1 // pred_check_branch
      %39 = sbr.rel (0) target = $region17
    $region16: #{tpu_custom_call.1} parent=1 // pred_region
      %s41 = ssub.s32 1024, 1024
      %42 = vsyncadd [#allocation6], %s41
      %s43 = sshll.u32 [#allocation5], 4
      %s44 = int_to_ptr.vmem [resolvable:$true] %s43
      %49 = dma.hbm_to_vmem [thread:$0]  %s3, 1024, %s44, [#allocation6], 128, 128, 8
    $region17: #{tpu_custom_call.1} parent=1 // pred_fallthru
      _
    // Predicated region
    $region18: #{tpu_custom_call.1} parent=1 // pred_check
      _
    $region19: #{tpu_custom_call.1} parent=1 // pred_check_branch
      %51 = sbr.rel (0) target = $region21
    $region20: #{tpu_custom_call.1} parent=1 // pred_region
      _
    $region21: #{tpu_custom_call.1} parent=1 // pred_fallthru
      _
    // Predicated region
    $region22: #{tpu_custom_call.1} parent=1 // pred_check
      _
    $region23: #{tpu_custom_call.1} parent=1 // pred_check_branch
      %53 = sbr.rel (0) target = $region25
    $region24: #{tpu_custom_call.1} parent=1 // pred_region
      %s55 = ssub.s32 256, 256
      %56 = vsyncadd [#allocation6], %s55
      %s57 = sshll.u32 [#allocation7], 4
      %s58 = int_to_ptr.vmem [resolvable:$true] %s57
      %63 = dma.hbm_to_vmem [thread:$0]  %s5, 256, %s58, [#allocation6], 128, 128, 8
    $region25: #{tpu_custom_call.1} parent=1 // pred_fallthru
      _
    // Predicated region
    $region26: #{tpu_custom_call.1} parent=1 // pred_check
      _
    $region27: #{tpu_custom_call.1} parent=1 // pred_check_branch
      %65 = sbr.rel (0) target = $region29
    $region28: #{tpu_custom_call.1} parent=1 // pred_region
      %s67 = ssub.s32 256, 256
      %68 = vsyncadd [#allocation9], %s67
      %s69 = sshll.u32 [#allocation8], 4
      %s70 = int_to_ptr.vmem [resolvable:$true] %s69
      %75 = dma.hbm_to_vmem [thread:$0]  %s6, 256, %s70, [#allocation9], 128, 128, 8
    $region29: #{tpu_custom_call.1} parent=1 // pred_fallthru
      _
    // Predicated region
    $region30: #{tpu_custom_call.1} parent=1 // pred_check
      _
    $region31: #{tpu_custom_call.1} parent=1 // pred_check_branch
      %77 = sbr.rel (0) target = $region33
    $region32: #{tpu_custom_call.1} parent=1 // pred_region
      %s79 = ssub.s32 512, 512
      %80 = vsyncadd [#allocation9], %s79
      %s81 = sshll.u32 [#allocation10], 4
      %s82 = int_to_ptr.vmem [resolvable:$true] %s81
      %87 = dma.hbm_to_vmem [thread:$0]  %s7, 512, %s82, [#allocation9], 128, 128, 8
    $region33: #{tpu_custom_call.1} parent=1 // pred_fallthru
      _
    // Predicated region
    $region34: #{tpu_custom_call.1} parent=1 // pred_check
      _
    $region35: #{tpu_custom_call.1} parent=1 // pred_check_branch
      %89 = sbr.rel (0) target = $region37
    $region36: #{tpu_custom_call.1} parent=1 // pred_region
      _
    $region37: #{tpu_custom_call.1} parent=1 // pred_fallthru
      _
    // Predicated region
    $region38: #{tpu_custom_call.1} parent=1 // pred_check
      _
    $region39: #{tpu_custom_call.1} parent=1 // pred_check_branch
      %91 = sbr.rel (0) target = $region41
    $region40: #{tpu_custom_call.1} parent=1 // pred_region
      %92 = dma.done [#allocation3], 512
    $region41: #{tpu_custom_call.1} parent=1 // pred_fallthru
      _
    // Predicated region
    $region42: #{tpu_custom_call.1} parent=1 // pred_check
      _
    $region43: #{tpu_custom_call.1} parent=1 // pred_check_branch
      %94 = sbr.rel (0) target = $region45
    $region44: #{tpu_custom_call.1} parent=1 // pred_region
      %95 = dma.done [#allocation6], 1024
    $region45: #{tpu_custom_call.1} parent=1 // pred_fallthru
      _
    // Predicated region
    $region46: #{tpu_custom_call.1} parent=1 // pred_check
      _
    $region47: #{tpu_custom_call.1} parent=1 // pred_check_branch
      %97 = sbr.rel (0) target = $region49
    $region48: #{tpu_custom_call.1} parent=1 // pred_region
      %98 = dma.done [#allocation6], 256
    $region49: #{tpu_custom_call.1} parent=1 // pred_fallthru
      _
    // Predicated region
    $region50: #{tpu_custom_call.1} parent=1 // pred_check
      _
    $region51: #{tpu_custom_call.1} parent=1 // pred_check_branch
      %100 = sbr.rel (0) target = $region53
    $region52: #{tpu_custom_call.1} parent=1 // pred_region
      %101 = dma.done [#allocation9], 256
    $region53: #{tpu_custom_call.1} parent=1 // pred_fallthru
      _
    // Predicated region
    $region54: #{tpu_custom_call.1} parent=1 // pred_check
      _
    $region55: #{tpu_custom_call.1} parent=1 // pred_check_branch
      %103 = sbr.rel (0) target = $region57
    $region56: #{tpu_custom_call.1} parent=1 // pred_region
      %104 = dma.done [#allocation9], 512
    $region57: #{tpu_custom_call.1} parent=1 // pred_fallthru
      _
    %v105 = vlaneseq
    %v106 = vand.u32 %v105, 127
    %v107 = vld [vmem:[%s0] sm:$0xff]
    %108 = vset.pattern.permute.xlu0 0
    %109 = vperm.xlu0 %108, %v107
    %v110 = vpop.permute.xlu0 %109
    %vm111 = vcmp.eq.s32.totalorder %v106, %v110
    %v112 = vsel %vm111, 1, 0
    %v113 = vcvt.s32.f32 %v112
    %v114 = vld [vmem:[#allocation2] sm:$0xff]
    %v115 = vld [vmem:[#allocation2 + $0x8] sm:$0xff]
    %v116 = vld [vmem:[#allocation2 + $0x10] sm:$0xff]
    %v117 = vld [vmem:[#allocation2 + $0x18] sm:$0xff]
    %vm118 = vcmask 261120
    %v120 = vsel %vm118, %v113, 0
    %122 = vmatprep.subr.mxu0 0.0
    %123 = vmatpush1.msra.mxu0 0.0
    %124 = vmatprep.subr.mxu0 0.0
    %125 = vmatpush1.msra.mxu0 0.0
    %126 = vmatprep.subr.mxu0 0.0
    %127 = vmatpush1.msra.mxu0 0.0
    %128 = vmatprep.subr.mxu0 0.0
    %129 = vmatpush1.msra.mxu0 0.0
    %130 = vmatprep.subr.mxu0 0.0
    %131 = vmatpush1.msra.mxu0 0.0
    %132 = vmatprep.subr.mxu0 0.0
    %133 = vmatpush1.msra.mxu0 0.0
    %134 = vmatprep.subr.mxu0 0.0
    %135 = vmatpush1.msra.mxu0 0.0
    %136 = vmatprep.subr.mxu0 0.0
    %137 = vmatpush1.msra.mxu0 0.0
    %138 = vmatprep.subr.mxu0 0.0
    %139 = vmatpush1.msra.mxu0 0.0
    %140 = vmatprep.subr.mxu0 0.0
    %141 = vmatpush1.msra.mxu0 0.0
    %142 = vmatprep.subr.mxu0 0.0
    %143 = vmatpush1.msra.mxu0 0.0
    %144 = vmatprep.subr.mxu0 0.0
    %145 = vmatpush1.msra.mxu0 0.0
    %146 = vmatprep.subr.mxu0 0.0
    %147 = vmatpush1.msra.mxu0 %v117
    %148 = vmatprep.subr.mxu0 0.0
    %149 = vmatpush1.msra.mxu0 %v116
    %150 = vmatprep.subr.mxu0 0.0
    %151 = vmatpush1.msra.mxu0 %v115
    %152 = vmatprep.subr.mxu0 0.0
    %153 = vmatpush1.msra.mxu0 %v114
    %154 = vmatprep.subr.mxu0 0.0
    %155 = vmatpush2.msra.mxu0 0.0
    %156 = vmatprep.subr.mxu0 0.0
    %157 = vmatpush2.msra.mxu0 0.0
    %158 = vmatprep.subr.mxu0 0.0
    %159 = vmatpush2.msra.mxu0 0.0
    %160 = vmatprep.subr.mxu0 0.0
    %161 = vmatpush2.msra.mxu0 0.0
    %162 = vmatprep.subr.mxu0 0.0
    %163 = vmatpush2.msra.mxu0 0.0
    %164 = vmatprep.subr.mxu0 0.0
    %165 = vmatpush2.msra.mxu0 0.0
    %166 = vmatprep.subr.mxu0 0.0
    %167 = vmatpush2.msra.mxu0 0.0
    %168 = vmatprep.subr.mxu0 0.0
    %169 = vmatpush2.msra.mxu0 0.0
    %170 = vmatprep.subr.mxu0 0.0
    %171 = vmatpush2.msra.mxu0 0.0
    %172 = vmatprep.subr.mxu0 0.0
    %173 = vmatpush2.msra.mxu0 0.0
    %174 = vmatprep.subr.mxu0 0.0
    %175 = vmatpush2.msra.mxu0 0.0
    %176 = vmatprep.subr.mxu0 0.0
    %177 = vmatpush2.msra.mxu0 0.0
    %178 = vmatprep.subr.mxu0 0.0
    %179 = vmatpush2.msra.mxu0 0.0
    %180 = vmatprep.subr.mxu0 0.0
    %181 = vmatpush2.msra.mxu0 0.0
    %182 = vmatprep.subr.mxu0 0.0
    %183 = vmatpush2.msra.mxu0 0.0
    %184 = vmatprep.subr.mxu0 0.0
    %185 = vmatpush2.msra.mxu0 0.0
    %186 = vmatprep.mubr.f32.mxu0 0.0
    %187 = vmatmul.mubr.f32.gmra.mxu0 %v120
    %v188 = vpop.f32.mrf.mxu0
    %v189 = vadd.f32 0.0, %v188
    %v190 = vpop.f32.mrf.mxu0
    %191 = vdwg.mxu0
    %v192 = vld [vmem:[#allocation7] sm:$0xff]
    %v193 = vld [vmem:[#allocation5] sm:$0xff]
    %v194 = vld [vmem:[#allocation5 + $0x8] sm:$0xff]
    %v195 = vld [vmem:[#allocation5 + $0x10] sm:$0xff]
    %v196 = vld [vmem:[#allocation5 + $0x18] sm:$0xff]
    %v197 = vld [vmem:[%s4] sm:$0x1]
    %v199 = vlaneseq
    %v200 = vshrl.u32 %v199, 7
    %v201 = vsub.s32 0, %v200
    %v202 = vrot.slane %v197, %v201
    %v205 = vsel %vm118, %v192, 0
    %207 = vmatprep.subr.mxu0 0.0
    %208 = vmatpush1.msra.mxu0 0.0
    %209 = vmatprep.subr.mxu0 0.0
    %210 = vmatpush1.msra.mxu0 0.0
    %211 = vmatprep.subr.mxu0 0.0
    %212 = vmatpush1.msra.mxu0 0.0
    %213 = vmatprep.subr.mxu0 0.0
    %214 = vmatpush1.msra.mxu0 0.0
    %215 = vmatprep.subr.mxu0 0.0
    %216 = vmatpush1.msra.mxu0 0.0
    %217 = vmatprep.subr.mxu0 0.0
    %218 = vmatpush1.msra.mxu0 0.0
    %219 = vmatprep.subr.mxu0 0.0
    %220 = vmatpush1.msra.mxu0 0.0
    %221 = vmatprep.subr.mxu0 0.0
    %222 = vmatpush1.msra.mxu0 0.0
    %223 = vmatprep.subr.mxu0 0.0
    %224 = vmatpush1.msra.mxu0 0.0
    %225 = vmatprep.subr.mxu0 0.0
    %226 = vmatpush1.msra.mxu0 0.0
    %227 = vmatprep.subr.mxu0 0.0
    %228 = vmatpush1.msra.mxu0 0.0
    %229 = vmatprep.subr.mxu0 0.0
    %230 = vmatpush1.msra.mxu0 0.0
    %231 = vmatprep.subr.mxu0 0.0
    %232 = vmatpush1.msra.mxu0 %v196
    %233 = vmatprep.subr.mxu0 0.0
    %234 = vmatpush1.msra.mxu0 %v195
    %235 = vmatprep.subr.mxu0 0.0
    %236 = vmatpush1.msra.mxu0 %v194
    %237 = vmatprep.subr.mxu0 0.0
    %238 = vmatpush1.msra.mxu0 %v193
    %239 = vmatprep.subr.mxu0 0.0
    %240 = vmatpush2.msra.mxu0 0.0
    %241 = vmatprep.subr.mxu0 0.0
    %242 = vmatpush2.msra.mxu0 0.0
    %243 = vmatprep.subr.mxu0 0.0
    %244 = vmatpush2.msra.mxu0 0.0
    %245 = vmatprep.subr.mxu0 0.0
    %246 = vmatpush2.msra.mxu0 0.0
    %247 = vmatprep.subr.mxu0 0.0
    %248 = vmatpush2.msra.mxu0 0.0
    %249 = vmatprep.subr.mxu0 0.0
    %250 = vmatpush2.msra.mxu0 0.0
    %251 = vmatprep.subr.mxu0 0.0
    %252 = vmatpush2.msra.mxu0 0.0
    %253 = vmatprep.subr.mxu0 0.0
    %254 = vmatpush2.msra.mxu0 0.0
    %255 = vmatprep.subr.mxu0 0.0
    %256 = vmatpush2.msra.mxu0 0.0
    %257 = vmatprep.subr.mxu0 0.0
    %258 = vmatpush2.msra.mxu0 0.0
    %259 = vmatprep.subr.mxu0 0.0
    %260 = vmatpush2.msra.mxu0 0.0
    %261 = vmatprep.subr.mxu0 0.0
    %262 = vmatpush2.msra.mxu0 0.0
    %263 = vmatprep.subr.mxu0 0.0
    %264 = vmatpush2.msra.mxu0 0.0
    %265 = vmatprep.subr.mxu0 0.0
    %266 = vmatpush2.msra.mxu0 0.0
    %267 = vmatprep.subr.mxu0 0.0
    %268 = vmatpush2.msra.mxu0 0.0
    %269 = vmatprep.subr.mxu0 0.0
    %270 = vmatpush2.msra.mxu0 0.0
    %271 = vmatprep.mubr.f32.mxu0 0.0
    %272 = vmatmul.mubr.f32.gmra.mxu0 %v205
    %v273 = vpop.f32.mrf.mxu0
    %v274 = vadd.f32 %v202, %v273
    %v275 = vpop.f32.mrf.mxu0
    %276 = vdwg.mxu0
    %s277 = scalar_lea.vmem [#allocation7], 8
    %v278 = vld [vmem:[%s277] sm:$0xff]
    %s279 = scalar_lea.vmem [#allocation5], 32
    %v280 = vld [vmem:[%s279] sm:$0xff]
    %v281 = vld [vmem:[%s279 + $0x8] sm:$0xff]
    %v282 = vld [vmem:[%s279 + $0x10] sm:$0xff]
    %v283 = vld [vmem:[%s279 + $0x18] sm:$0xff]
    %s284 = scalar_lea.vmem %s4, 1
    %v285 = vld [vmem:[%s284] sm:$0x1]
    %v287 = vlaneseq
    %v288 = vshrl.u32 %v287, 7
    %v289 = vsub.s32 0, %v288
    %v290 = vrot.slane %v285, %v289
    %v293 = vsel %vm118, %v278, 0
    %295 = vmatprep.subr.mxu0 0.0
    %296 = vmatpush1.msra.mxu0 0.0
    %297 = vmatprep.subr.mxu0 0.0
    %298 = vmatpush1.msra.mxu0 0.0
    %299 = vmatprep.subr.mxu0 0.0
    %300 = vmatpush1.msra.mxu0 0.0
    %301 = vmatprep.subr.mxu0 0.0
    %302 = vmatpush1.msra.mxu0 0.0
    %303 = vmatprep.subr.mxu0 0.0
    %304 = vmatpush1.msra.mxu0 0.0
    %305 = vmatprep.subr.mxu0 0.0
    %306 = vmatpush1.msra.mxu0 0.0
    %307 = vmatprep.subr.mxu0 0.0
    %308 = vmatpush1.msra.mxu0 0.0
    %309 = vmatprep.subr.mxu0 0.0
    %310 = vmatpush1.msra.mxu0 0.0
    %311 = vmatprep.subr.mxu0 0.0
    %312 = vmatpush1.msra.mxu0 0.0
    %313 = vmatprep.subr.mxu0 0.0
    %314 = vmatpush1.msra.mxu0 0.0
    %315 = vmatprep.subr.mxu0 0.0
    %316 = vmatpush1.msra.mxu0 0.0
    %317 = vmatprep.subr.mxu0 0.0
    %318 = vmatpush1.msra.mxu0 0.0
    %319 = vmatprep.subr.mxu0 0.0
    %320 = vmatpush1.msra.mxu0 %v283
    %321 = vmatprep.subr.mxu0 0.0
    %322 = vmatpush1.msra.mxu0 %v282
    %323 = vmatprep.subr.mxu0 0.0
    %324 = vmatpush1.msra.mxu0 %v281
    %325 = vmatprep.subr.mxu0 0.0
    %326 = vmatpush1.msra.mxu0 %v280
    %327 = vmatprep.subr.mxu0 0.0
    %328 = vmatpush2.msra.mxu0 0.0
    %329 = vmatprep.subr.mxu0 0.0
    %330 = vmatpush2.msra.mxu0 0.0
    %331 = vmatprep.subr.mxu0 0.0
    %332 = vmatpush2.msra.mxu0 0.0
    %333 = vmatprep.subr.mxu0 0.0
    %334 = vmatpush2.msra.mxu0 0.0
    %335 = vmatprep.subr.mxu0 0.0
    %336 = vmatpush2.msra.mxu0 0.0
    %337 = vmatprep.subr.mxu0 0.0
    %338 = vmatpush2.msra.mxu0 0.0
    %339 = vmatprep.subr.mxu0 0.0
    %340 = vmatpush2.msra.mxu0 0.0
    %341 = vmatprep.subr.mxu0 0.0
    %342 = vmatpush2.msra.mxu0 0.0
    %343 = vmatprep.subr.mxu0 0.0
    %344 = vmatpush2.msra.mxu0 0.0
    %345 = vmatprep.subr.mxu0 0.0
    %346 = vmatpush2.msra.mxu0 0.0
    %347 = vmatprep.subr.mxu0 0.0
    %348 = vmatpush2.msra.mxu0 0.0
    %349 = vmatprep.subr.mxu0 0.0
    %350 = vmatpush2.msra.mxu0 0.0
    %351 = vmatprep.subr.mxu0 0.0
    %352 = vmatpush2.msra.mxu0 0.0
    %353 = vmatprep.subr.mxu0 0.0
    %354 = vmatpush2.msra.mxu0 0.0
    %355 = vmatprep.subr.mxu0 0.0
    %356 = vmatpush2.msra.mxu0 0.0
    %357 = vmatprep.subr.mxu0 0.0
    %358 = vmatpush2.msra.mxu0 0.0
    %359 = vmatprep.mubr.f32.mxu0 0.0
    %360 = vmatmul.mubr.f32.gmra.mxu0 %v293
    %v361 = vpop.f32.mrf.mxu0
    %v362 = vadd.f32 %v290, %v361
    %v363 = vpop.f32.mrf.mxu0
    %364 = vdwg.mxu0
    %v365 = vld [vmem:[%s2] sm:$0xff]
    %v366 = vld [vmem:[%s2 + $0x8] sm:$0xff]
    %v367 = vld [vmem:[%s2 + $0x10] sm:$0xff]
    %v368 = vld [vmem:[%s2 + $0x18] sm:$0xff]
    %v370 = vsel %vm118, %v189, 0
    %372 = vmatprep.subr.mxu0 0.0
    %373 = vmatpush1.msra.mxu0 0.0
    %374 = vmatprep.subr.mxu0 0.0
    %375 = vmatpush1.msra.mxu0 0.0
    %376 = vmatprep.subr.mxu0 0.0
    %377 = vmatpush1.msra.mxu0 0.0
    %378 = vmatprep.subr.mxu0 0.0
    %379 = vmatpush1.msra.mxu0 0.0
    %380 = vmatprep.subr.mxu0 0.0
    %381 = vmatpush1.msra.mxu0 0.0
    %382 = vmatprep.subr.mxu0 0.0
    %383 = vmatpush1.msra.mxu0 0.0
    %384 = vmatprep.subr.mxu0 0.0
    %385 = vmatpush1.msra.mxu0 0.0
    %386 = vmatprep.subr.mxu0 0.0
    %387 = vmatpush1.msra.mxu0 0.0
    %388 = vmatprep.subr.mxu0 0.0
    %389 = vmatpush1.msra.mxu0 0.0
    %390 = vmatprep.subr.mxu0 0.0
    %391 = vmatpush1.msra.mxu0 0.0
    %392 = vmatprep.subr.mxu0 0.0
    %393 = vmatpush1.msra.mxu0 0.0
    %394 = vmatprep.subr.mxu0 0.0
    %395 = vmatpush1.msra.mxu0 0.0
    %396 = vmatprep.subr.mxu0 0.0
    %397 = vmatpush1.msra.mxu0 %v368
    %398 = vmatprep.subr.mxu0 0.0
    %399 = vmatpush1.msra.mxu0 %v367
    %400 = vmatprep.subr.mxu0 0.0
    %401 = vmatpush1.msra.mxu0 %v366
    %402 = vmatprep.subr.mxu0 0.0
    %403 = vmatpush1.msra.mxu0 %v365
    %404 = vmatprep.subr.mxu0 0.0
    %405 = vmatpush2.msra.mxu0 0.0
    %406 = vmatprep.subr.mxu0 0.0
    %407 = vmatpush2.msra.mxu0 0.0
    %408 = vmatprep.subr.mxu0 0.0
    %409 = vmatpush2.msra.mxu0 0.0
    %410 = vmatprep.subr.mxu0 0.0
    %411 = vmatpush2.msra.mxu0 0.0
    %412 = vmatprep.subr.mxu0 0.0
    %413 = vmatpush2.msra.mxu0 0.0
    %414 = vmatprep.subr.mxu0 0.0
    %415 = vmatpush2.msra.mxu0 0.0
    %416 = vmatprep.subr.mxu0 0.0
    %417 = vmatpush2.msra.mxu0 0.0
    %418 = vmatprep.subr.mxu0 0.0
    %419 = vmatpush2.msra.mxu0 0.0
    %420 = vmatprep.subr.mxu0 0.0
    %421 = vmatpush2.msra.mxu0 0.0
    %422 = vmatprep.subr.mxu0 0.0
    %423 = vmatpush2.msra.mxu0 0.0
    %424 = vmatprep.subr.mxu0 0.0
    %425 = vmatpush2.msra.mxu0 0.0
    %426 = vmatprep.subr.mxu0 0.0
    %427 = vmatpush2.msra.mxu0 0.0
    %428 = vmatprep.subr.mxu0 0.0
    %429 = vmatpush2.msra.mxu0 0.0
    %430 = vmatprep.subr.mxu0 0.0
    %431 = vmatpush2.msra.mxu0 0.0
    %432 = vmatprep.subr.mxu0 0.0
    %433 = vmatpush2.msra.mxu0 0.0
    %434 = vmatprep.subr.mxu0 0.0
    %435 = vmatpush2.msra.mxu0 0.0
    %436 = vmatprep.mubr.f32.mxu0 0.0
    %437 = vmatmul.mubr.f32.gmra.mxu0 %v370
    %v438 = vpop.f32.mrf.mxu0
    %v439 = vadd.f32 %v274, %v438
    %v440 = vpop.f32.mrf.mxu0
    %441 = vdwg.mxu0
    %v442 = vxor.u32 %v439, 2147483648
    %v443 = vmul.f32 %v442, 1.442695
    %v444 = vpow.pop %v443
    %v445 = vadd.f32 %v444, 1.0
    %v446 = vrcp.pop %v445
    %v447 = vmul.f32 1.0, %v446
    %v448 = vtanh.pop %v439
    %v449 = vld [vmem:[#allocation8] sm:$0xff]
    %451 = vrot.lane.b32.xlu0 %v449, 32
    %v452 = vpop.permute.xlu0 %451
    %v454 = vmul.f32 %v447, %v452
    %456 = vrot.lane.b32.xlu0 %v448, 64
    %v457 = vpop.permute.xlu0 %456
    %v459 = vmul.f32 %v447, %v457
    %461 = vrot.lane.b32.xlu0 %v459, 32
    %v462 = vpop.permute.xlu0 %461
    %v464 = vadd.f32 %v454, %v462
    %v465 = vtanh.pop %v464
    %467 = vrot.lane.b32.xlu0 %v465, 64
    %v468 = vpop.permute.xlu0 %467
    %v470 = vmul.f32 %v447, %v468
    %472 = vrot.lane.b32.xlu0 %v470, 32
    %v473 = vpop.permute.xlu0 %472
    %475 = vst.msk [vmem:[#allocation12] sm:$0xff] %vm118, %v473
    %477 = vrot.lane.b32.xlu0 %v464, 96
    %v478 = vpop.permute.xlu0 %477
    %480 = vst.msk [vmem:[#allocation14] sm:$0xff] %vm118, %v478
    %s481 = scalar_lea.vmem %s2, 32
    %v482 = vld [vmem:[%s481] sm:$0xff]
    %v483 = vld [vmem:[%s481 + $0x8] sm:$0xff]
    %v484 = vld [vmem:[%s481 + $0x10] sm:$0xff]
    %v485 = vld [vmem:[%s481 + $0x18] sm:$0xff]
    %v486 = vsel %vm118, %v473, 0
    %488 = vmatprep.subr.mxu0 0.0
    %489 = vmatpush1.msra.mxu0 0.0
    %490 = vmatprep.subr.mxu0 0.0
    %491 = vmatpush1.msra.mxu0 0.0
    %492 = vmatprep.subr.mxu0 0.0
    %493 = vmatpush1.msra.mxu0 0.0
    %494 = vmatprep.subr.mxu0 0.0
    %495 = vmatpush1.msra.mxu0 0.0
    %496 = vmatprep.subr.mxu0 0.0
    %497 = vmatpush1.msra.mxu0 0.0
    %498 = vmatprep.subr.mxu0 0.0
    %499 = vmatpush1.msra.mxu0 0.0
    %500 = vmatprep.subr.mxu0 0.0
    %501 = vmatpush1.msra.mxu0 0.0
    %502 = vmatprep.subr.mxu0 0.0
    %503 = vmatpush1.msra.mxu0 0.0
    %504 = vmatprep.subr.mxu0 0.0
    %505 = vmatpush1.msra.mxu0 0.0
    %506 = vmatprep.subr.mxu0 0.0
    %507 = vmatpush1.msra.mxu0 0.0
    %508 = vmatprep.subr.mxu0 0.0
    %509 = vmatpush1.msra.mxu0 0.0
    %510 = vmatprep.subr.mxu0 0.0
    %511 = vmatpush1.msra.mxu0 0.0
    %512 = vmatprep.subr.mxu0 0.0
    %513 = vmatpush1.msra.mxu0 %v485
    %514 = vmatprep.subr.mxu0 0.0
    %515 = vmatpush1.msra.mxu0 %v484
    %516 = vmatprep.subr.mxu0 0.0
    %517 = vmatpush1.msra.mxu0 %v483
    %518 = vmatprep.subr.mxu0 0.0
    %519 = vmatpush1.msra.mxu0 %v482
    %520 = vmatprep.subr.mxu0 0.0
    %521 = vmatpush2.msra.mxu0 0.0
    %522 = vmatprep.subr.mxu0 0.0
    %523 = vmatpush2.msra.mxu0 0.0
    %524 = vmatprep.subr.mxu0 0.0
    %525 = vmatpush2.msra.mxu0 0.0
    %526 = vmatprep.subr.mxu0 0.0
    %527 = vmatpush2.msra.mxu0 0.0
    %528 = vmatprep.subr.mxu0 0.0
    %529 = vmatpush2.msra.mxu0 0.0
    %530 = vmatprep.subr.mxu0 0.0
    %531 = vmatpush2.msra.mxu0 0.0
    %532 = vmatprep.subr.mxu0 0.0
    %533 = vmatpush2.msra.mxu0 0.0
    %534 = vmatprep.subr.mxu0 0.0
    %535 = vmatpush2.msra.mxu0 0.0
    %536 = vmatprep.subr.mxu0 0.0
    %537 = vmatpush2.msra.mxu0 0.0
    %538 = vmatprep.subr.mxu0 0.0
    %539 = vmatpush2.msra.mxu0 0.0
    %540 = vmatprep.subr.mxu0 0.0
    %541 = vmatpush2.msra.mxu0 0.0
    %542 = vmatprep.subr.mxu0 0.0
    %543 = vmatpush2.msra.mxu0 0.0
    %544 = vmatprep.subr.mxu0 0.0
    %545 = vmatpush2.msra.mxu0 0.0
    %546 = vmatprep.subr.mxu0 0.0
    %547 = vmatpush2.msra.mxu0 0.0
    %548 = vmatprep.subr.mxu0 0.0
    %549 = vmatpush2.msra.mxu0 0.0
    %550 = vmatprep.subr.mxu0 0.0
    %551 = vmatpush2.msra.mxu0 0.0
    %552 = vmatprep.mubr.f32.mxu0 0.0
    %553 = vmatmul.mubr.f32.gmra.mxu0 %v486
    %v554 = vpop.f32.mrf.mxu0
    %v555 = vadd.f32 %v362, %v554
    %v556 = vpop.f32.mrf.mxu0
    %557 = vdwg.mxu0
    %v558 = vxor.u32 %v555, 2147483648
    %v559 = vmul.f32 %v558, 1.442695
    %v560 = vpow.pop %v559
    %v561 = vadd.f32 %v560, 1.0
    %v562 = vrcp.pop %v561
    %v563 = vmul.f32 1.0, %v562
    %v564 = vtanh.pop %v555
    %s565 = scalar_lea.vmem [#allocation8], 8
    %v566 = vld [vmem:[%s565] sm:$0xff]
    %568 = vrot.lane.b32.xlu0 %v566, 32
    %v569 = vpop.permute.xlu0 %568
    %v571 = vmul.f32 %v563, %v569
    %573 = vrot.lane.b32.xlu0 %v564, 64
    %v574 = vpop.permute.xlu0 %573
    %v576 = vmul.f32 %v563, %v574
    %578 = vrot.lane.b32.xlu0 %v576, 32
    %v579 = vpop.permute.xlu0 %578
    %v581 = vadd.f32 %v571, %v579
    %v582 = vtanh.pop %v581
    %584 = vrot.lane.b32.xlu0 %v582, 64
    %v585 = vpop.permute.xlu0 %584
    %v587 = vmul.f32 %v563, %v585
    %589 = vrot.lane.b32.xlu0 %v587, 32
    %v590 = vpop.permute.xlu0 %589
    %s592 = scalar_lea.vmem [#allocation12], 8
    %593 = vst.msk [vmem:[%s592] sm:$0xff] %vm118, %v590
    %595 = vrot.lane.b32.xlu0 %v581, 96
    %v596 = vpop.permute.xlu0 %595
    %s598 = scalar_lea.vmem [#allocation14], 8
    %599 = vst.msk [vmem:[%s598] sm:$0xff] %vm118, %v596
    %v600 = vld [vmem:[#allocation10] sm:$0xff]
    %v601 = vld [vmem:[#allocation10 + $0x8] sm:$0xff]
    %v602 = vld [vmem:[#allocation10 + $0x10] sm:$0xff]
    %v603 = vld [vmem:[#allocation10 + $0x18] sm:$0xff]
    %v604 = vld [vmem:[%s8] sm:$0x1]
    %v606 = vlaneseq
    %v607 = vshrl.u32 %v606, 7
    %v608 = vsub.s32 0, %v607
    %v609 = vrot.slane %v604, %v608
    %v611 = vsel %vm118, %v590, 0
    %613 = vmatprep.subr.mxu0 0.0
    %614 = vmatpush1.msra.mxu0 0.0
    %615 = vmatprep.subr.mxu0 0.0
    %616 = vmatpush1.msra.mxu0 0.0
    %617 = vmatprep.subr.mxu0 0.0
    %618 = vmatpush1.msra.mxu0 0.0
    %619 = vmatprep.subr.mxu0 0.0
    %620 = vmatpush1.msra.mxu0 0.0
    %621 = vmatprep.subr.mxu0 0.0
    %622 = vmatpush1.msra.mxu0 0.0
    %623 = vmatprep.subr.mxu0 0.0
    %624 = vmatpush1.msra.mxu0 0.0
    %625 = vmatprep.subr.mxu0 0.0
    %626 = vmatpush1.msra.mxu0 0.0
    %627 = vmatprep.subr.mxu0 0.0
    %628 = vmatpush1.msra.mxu0 0.0
    %629 = vmatprep.subr.mxu0 0.0
    %630 = vmatpush1.msra.mxu0 0.0
    %631 = vmatprep.subr.mxu0 0.0
    %632 = vmatpush1.msra.mxu0 0.0
    %633 = vmatprep.subr.mxu0 0.0
    %634 = vmatpush1.msra.mxu0 0.0
    %635 = vmatprep.subr.mxu0 0.0
    %636 = vmatpush1.msra.mxu0 0.0
    %637 = vmatprep.subr.mxu0 0.0
    %638 = vmatpush1.msra.mxu0 %v603
    %639 = vmatprep.subr.mxu0 0.0
    %640 = vmatpush1.msra.mxu0 %v602
    %641 = vmatprep.subr.mxu0 0.0
    %642 = vmatpush1.msra.mxu0 %v601
    %643 = vmatprep.subr.mxu0 0.0
    %644 = vmatpush1.msra.mxu0 %v600
    %645 = vmatprep.subr.mxu0 0.0
    %646 = vmatpush2.msra.mxu0 0.0
    %647 = vmatprep.subr.mxu0 0.0
    %648 = vmatpush2.msra.mxu0 0.0
    %649 = vmatprep.subr.mxu0 0.0
    %650 = vmatpush2.msra.mxu0 0.0
    %651 = vmatprep.subr.mxu0 0.0
    %652 = vmatpush2.msra.mxu0 0.0
    %653 = vmatprep.subr.mxu0 0.0
    %654 = vmatpush2.msra.mxu0 0.0
    %655 = vmatprep.subr.mxu0 0.0
    %656 = vmatpush2.msra.mxu0 0.0
    %657 = vmatprep.subr.mxu0 0.0
    %658 = vmatpush2.msra.mxu0 0.0
    %659 = vmatprep.subr.mxu0 0.0
    %660 = vmatpush2.msra.mxu0 0.0
    %661 = vmatprep.subr.mxu0 0.0
    %662 = vmatpush2.msra.mxu0 0.0
    %663 = vmatprep.subr.mxu0 0.0
    %664 = vmatpush2.msra.mxu0 0.0
    %665 = vmatprep.subr.mxu0 0.0
    %666 = vmatpush2.msra.mxu0 0.0
    %667 = vmatprep.subr.mxu0 0.0
    %668 = vmatpush2.msra.mxu0 0.0
    %669 = vmatprep.subr.mxu0 0.0
    %670 = vmatpush2.msra.mxu0 0.0
    %671 = vmatprep.subr.mxu0 0.0
    %672 = vmatpush2.msra.mxu0 0.0
    %673 = vmatprep.subr.mxu0 0.0
    %674 = vmatpush2.msra.mxu0 0.0
    %675 = vmatprep.subr.mxu0 0.0
    %676 = vmatpush2.msra.mxu0 0.0
    %677 = vmatprep.mubr.f32.mxu0 0.0
    %678 = vmatmul.mubr.f32.gmra.mxu0 %v611
    %v679 = vpop.f32.mrf.mxu0
    %v680 = vadd.f32 %v609, %v679
    %v681 = vpop.f32.mrf.mxu0
    %682 = vdwg.mxu0
    %683 = vst.msk [vmem:[#allocation11] sm:$0xff] %vm118, %v680
    // Predicated region
    $region58: #{tpu_custom_call.1} parent=1 // pred_check
      _
    $region59: #{tpu_custom_call.1} parent=1 // pred_check_branch
      %685 = sbr.rel (0) target = $region61
    $region60: #{tpu_custom_call.1} parent=1 // pred_region
      %s687 = ssub.s32 128, 128
      %688 = vsyncadd [#allocation4], %s687
      %s690 = sshll.u32 [#allocation11], 4
      %s691 = int_to_ptr.vmem [resolvable:$true] %s690
      %693 = dma.vmem_to_hbm [thread:$0]  %s691, 128, %s9, [#allocation4]
    $region61: #{tpu_custom_call.1} parent=1 // pred_fallthru
      _
    // Predicated region
    $region62: #{tpu_custom_call.1} parent=1 // pred_check
      _
    $region63: #{tpu_custom_call.1} parent=1 // pred_check_branch
      %695 = sbr.rel (0) target = $region65
    $region64: #{tpu_custom_call.1} parent=1 // pred_region
      %s697 = ssub.s32 256, 256
      %698 = vsyncadd [#allocation13], %s697
      %s699 = sshll.u32 [#allocation12], 4
      %s700 = int_to_ptr.vmem [resolvable:$true] %s699
      %705 = dma.vmem_to_hbm [thread:$0]  %s700, 256, %s10, [#allocation13], 128, 128, 8
    $region65: #{tpu_custom_call.1} parent=1 // pred_fallthru
      _
    // Predicated region
    $region66: #{tpu_custom_call.1} parent=1 // pred_check
      _
    $region67: #{tpu_custom_call.1} parent=1 // pred_check_branch
      %707 = sbr.rel (0) target = $region69
    $region68: #{tpu_custom_call.1} parent=1 // pred_region
      %s709 = ssub.s32 256, 256
      %710 = vsyncadd [#allocation13], %s709
      %s711 = sshll.u32 [#allocation14], 4
      %s712 = int_to_ptr.vmem [resolvable:$true] %s711
      %717 = dma.vmem_to_hbm [thread:$0]  %s712, 256, %s11, [#allocation13], 128, 128, 8
    $region69: #{tpu_custom_call.1} parent=1 // pred_fallthru
      _
    // Predicated region
    $region70: #{tpu_custom_call.1} parent=1 // pred_check
      _
    $region71: #{tpu_custom_call.1} parent=1 // pred_check_branch
      %719 = sbr.rel (0) target = $region73
    $region72: #{tpu_custom_call.1} parent=1 // pred_region
      %720 = dma.done [#allocation4], 128
    $region73: #{tpu_custom_call.1} parent=1 // pred_fallthru
      _
    // Predicated region
    $region74: #{tpu_custom_call.1} parent=1 // pred_check
      _
    $region75: #{tpu_custom_call.1} parent=1 // pred_check_branch
      %722 = sbr.rel (0) target = $region77
    $region76: #{tpu_custom_call.1} parent=1 // pred_region
      %723 = dma.done [#allocation13], 256
    $region77: #{tpu_custom_call.1} parent=1 // pred_fallthru
      _
    // Predicated region
    $region78: #{tpu_custom_call.1} parent=1 // pred_check
      _
    $region79: #{tpu_custom_call.1} parent=1 // pred_check_branch
      %725 = sbr.rel (0) target = $region81
    $region80: #{tpu_custom_call.1} parent=1 // pred_region
      %726 = dma.done [#allocation13], 256
    $region81: #{tpu_custom_call.1} parent=1 // pred_fallthru
      _
    %727 = vsyncpa [#allocation3], 1
    %728 = vsyncpa [#allocation6], 1
    %729 = vsyncpa [#allocation9], 1
    %730 = vsyncpa [#allocation4], 1
    %731 = vsyncpa [#allocation13], 1

</llo_original>
